<compile_context>
chip_gen: v6e
topology: v6e:2x2x1
jax: 0.10.0
libtpu: 0.0.40
codegen_flags: <defaults>
</compile_context>

<pallas_src>
import functools

import jax
import jax.numpy as jnp
from jax import lax
from jax.experimental import pallas as pl
from jax.experimental.pallas import tpu as pltpu

N_CLASSES = 10
LANE = 128


def _round_up(n, m):
    return ((n + m - 1) // m) * m


def mlp_kernel(seed_ref, x_ref, w0_ref, b0_ref, w1_ref, b1_ref, w2_ref, b2_ref,
               out_ref, *, keep_thresh, inv_keep, n_classes):
    # fc0 + ReLU  (bf16 MXU inputs, f32 accumulation)
    h0 = jnp.dot(x_ref[...], w0_ref[...], preferred_element_type=jnp.float32)
    h0 = jnp.maximum(h0 + b0_ref[...], 0.0)

    # fc1 + ReLU
    h1 = jnp.dot(h0.astype(jnp.bfloat16), w1_ref[...],
                 preferred_element_type=jnp.float32)
    h1 = jnp.maximum(h1 + b1_ref[...], 0.0)

    # dropout (inverted dropout; F.dropout default is training=True).
    # Stateless counter-hash PRNG on the global element index: pure VPU int ops,
    # works on both the Mosaic and interpret backends, and the mask does not
    # depend on the batch tiling.
    if keep_thresh is not None:
        tm = h1.shape[0]
        rows = lax.broadcasted_iota(jnp.int32, h1.shape, 0)
        cols = lax.broadcasted_iota(jnp.int32, h1.shape, 1)
        gid = (pl.program_id(0) * tm + rows) * jnp.int32(h1.shape[1]) + cols
        u = gid.astype(jnp.uint32) ^ (seed_ref[0].astype(jnp.uint32)
                                      * jnp.uint32(0x9E3779B9))
        # lowbias32 integer finalizer
        u = u ^ (u >> 16)
        u = u * jnp.uint32(0x7FEB352D)
        u = u ^ (u >> 15)
        u = u * jnp.uint32(0x846CA68B)
        u = u ^ (u >> 16)
        r31 = (u >> 1).astype(jnp.int32)          # uniform over [0, 2^31)
        keep = r31 >= jnp.int32(keep_thresh)      # P(keep) = 1 - p
        h1 = jnp.where(keep, h1 * jnp.float32(inv_keep), 0.0)

    # fc2
    logits = jnp.dot(h1.astype(jnp.bfloat16), w2_ref[...],
                     preferred_element_type=jnp.float32) + b2_ref[...]

    # mask padded class lanes so they don't pollute the reductions
    lane = lax.broadcasted_iota(jnp.int32, logits.shape, 1)
    logits = jnp.where(lane < n_classes, logits, jnp.float32(-1e30))

    # log_softmax along the class axis (f32), stored as bf16 (lane-dense)
    m = jnp.max(logits, axis=-1, keepdims=True)
    shifted = logits - m
    lse = jnp.log(jnp.sum(jnp.exp(shifted), axis=-1, keepdims=True))
    out_ref[...] = (shifted - lse).astype(out_ref.dtype)


def model_b_forward(x, params, image_size, *, p=0.25, seed=0, training=True):
    """x: any shape whose trailing dims flatten to image_size (PyTorch .view(-1, image_size))."""
    w0, b0, w1, b1, w2, b2 = params
    H0, H1, H2 = w0.shape[1], w1.shape[1], w2.shape[1]   # lane-padded widths (128)

    x2d = x.reshape(-1, image_size).astype(jnp.bfloat16)
    B = x2d.shape[0]

    # ---- batch tiling (perf feedback) ----
    B16 = _round_up(B, 16)                              # bf16 native tile is (16, 128)
    # VMEM budget: double-buffered x/out tiles + ~4 live f32 (row,128) temporaries + weights,
    # kept under v5e's 16 MiB scoped default so the tile is portable to v6e/v7x.
    weight_bytes = 2 * 2 * (image_size * H0 + H0 * H1 + H1 * H2)     # bf16, double-buffered
    bytes_per_row = (2 * 2 * image_size          # bf16 x tile, double-buffered
                     + 2 * 2 * H2                # bf16 out tile, double-buffered
                     + 4 * 4 * LANE)             # f32 temporaries (h0/h1/logits/etc.)
    budget = max(2 * 1024 * 1024, 12 * 1024 * 1024 - weight_bytes)
    tm_cap = max(16, (budget // bytes_per_row) // 16 * 16)
    tm = min(2048, tm_cap, B16)
    # v7x has 2 TensorCores: keep >= 2 grid steps when the batch allows it.
    if B16 // tm < 2 and B16 >= 32:
        tm = _round_up(-(-B16 // 2), 16)
    Bp = _round_up(B16, tm)
    if Bp != B:
        x2d = jnp.pad(x2d, ((0, Bp - B), (0, 0)))

    # ---- dropout constants (static) ----
    p_eff = float(p) if training else 0.0
    if 0.0 < p_eff < 1.0:
        keep_thresh = min(int(round(p_eff * (1 << 31))), (1 << 31) - 1)
        inv_keep = 1.0 / (1.0 - p_eff)
    else:
        keep_thresh, inv_keep = None, 1.0

    kernel = functools.partial(mlp_kernel, keep_thresh=keep_thresh,
                               inv_keep=inv_keep, n_classes=N_CLASSES)
    seed_arr = jnp.asarray([seed], dtype=jnp.int32)

    flops = 2 * Bp * (image_size * H0 + H0 * H1 + H1 * H2)
    bytes_accessed = (int(x2d.size) * x2d.dtype.itemsize
                      + sum(int(a.size) * a.dtype.itemsize
                            for a in (w0, b0, w1, b1, w2, b2))
                      + Bp * H2 * 2)                                  # bf16 output

    out = pl.pallas_call(
        kernel,
        out_shape=jax.ShapeDtypeStruct((Bp, H2), jnp.bfloat16),
        grid_spec=pltpu.PrefetchScalarGridSpec(
            num_scalar_prefetch=1,                 # dropout seed -> SMEM
            grid=(Bp // tm,),
            in_specs=[
                pl.BlockSpec((tm, image_size), lambda i, seed: (i, 0)),
                pl.BlockSpec((image_size, H0), lambda i, seed: (0, 0)),
                pl.BlockSpec((1, H0),          lambda i, seed: (0, 0)),
                pl.BlockSpec((H0, H1),         lambda i, seed: (0, 0)),
                pl.BlockSpec((1, H1),          lambda i, seed: (0, 0)),
                pl.BlockSpec((H1, H2),         lambda i, seed: (0, 0)),
                pl.BlockSpec((1, H2),          lambda i, seed: (0, 0)),
            ],
            out_specs=pl.BlockSpec((tm, H2), lambda i, seed: (i, 0)),
        ),
        compiler_params=pltpu.CompilerParams(
            dimension_semantics=("parallel",)),    # batch tiles shard across TCs on v7x
        cost_estimate=pl.CostEstimate(
            flops=int(flops),
            transcendentals=int(Bp * H2),
            bytes_accessed=int(bytes_accessed)),
    )(seed_arr, x2d, w0, b0, w1, b1, w2, b2)

    # drop padded rows / padded class lanes; hand back f32 log-probs
    return out[:B, :N_CLASSES].astype(jnp.float32)


def init_params(key, image_size):
    """nn.Linear default init (uniform +/- 1/sqrt(fan_in)) on the REAL dims, zero-padded to
    lane-dense 128-wide slabs. Weights stored transposed (in_features, out_features) in bf16
    for the MXU; biases stay f32."""
    real = [(image_size, 100), (100, 50), (50, 10)]
    pad_in = [image_size, LANE, LANE]
    pad_out = [LANE, LANE, LANE]
    params = []
    for (fan_in, fan_out), pi, po in zip(real, pad_in, pad_out):
        key, kw, kb = jax.random.split(key, 3)
        bound = 1.0 / (fan_in ** 0.5)
        w = jax.random.uniform(kw, (fan_in, fan_out), jnp.float32, -bound, bound)
        b = jax.random.uniform(kb, (1, fan_out), jnp.float32, -bound, bound)
        w = jnp.pad(w, ((0, pi - fan_in), (0, po - fan_out))).astype(jnp.bfloat16)
        b = jnp.pad(b, ((0, 0), (0, po - fan_out)))           # f32
        params += [w, b]
    return tuple(params)


if __name__ == "__main__":
    image_size = 256                     # (2, 4, 16, 16) flattens to (8, 256)
    key = jax.random.PRNGKey(0)
    key, kx = jax.random.split(key)
    x = jax.random.normal(kx, (2, 4, 16, 16), jnp.float32)

    params = init_params(key, image_size)

    out = model_b_forward(x, params, image_size, p=0.25, seed=0, training=True)
    out = jax.block_until_ready(out)

    # sanity: log_softmax rows must exp-sum to 1 (bf16 storage -> loose tolerance)
    assert out.shape == (8, N_CLASSES), out.shape
    row_sums = jnp.sum(jnp.exp(out), axis=1)
    assert bool(jnp.all(jnp.abs(row_sums - 1.0) < 3e-2)), row_sums

    print("KERNEL_OK")
</pallas_src>

<mosaic_0001>
module attributes {stable_mosaic.version = 11 : i64} {
  func.func @mlp_kernel(%arg0: i32, %arg1: memref<1xi32, #tpu.memory_space<smem>>, %arg2: memref<16x256xbf16, #tpu.memory_space<vmem>>, %arg3: memref<256x128xbf16, #tpu.memory_space<vmem>>, %arg4: memref<1x128xf32, #tpu.memory_space<vmem>>, %arg5: memref<128x128xbf16, #tpu.memory_space<vmem>>, %arg6: memref<1x128xf32, #tpu.memory_space<vmem>>, %arg7: memref<128x128xbf16, #tpu.memory_space<vmem>>, %arg8: memref<1x128xf32, #tpu.memory_space<vmem>>, %arg9: memref<16x128xbf16, #tpu.memory_space<vmem>>) attributes {dimension_semantics = [#tpu.dimension_semantics<parallel>], iteration_bounds = array<i64: 1>, scalar_prefetch = 1 : i64, scratch_operands = 0 : i64, tpu.core_type = #tpu.core_type<tc>, window_params = [{transform_indices = @transform_0, window_bounds = array<i64: 16, 256>}, {pipeline_mode = #tpu.pipeline_mode<synchronous>, transform_indices = @transform_1, window_bounds = array<i64: 256, 128>}, {pipeline_mode = #tpu.pipeline_mode<synchronous>, transform_indices = @transform_2, window_bounds = array<i64: 1, 128>}, {pipeline_mode = #tpu.pipeline_mode<synchronous>, transform_indices = @transform_3, window_bounds = array<i64: 128, 128>}, {pipeline_mode = #tpu.pipeline_mode<synchronous>, transform_indices = @transform_4, window_bounds = array<i64: 1, 128>}, {pipeline_mode = #tpu.pipeline_mode<synchronous>, transform_indices = @transform_5, window_bounds = array<i64: 128, 128>}, {pipeline_mode = #tpu.pipeline_mode<synchronous>, transform_indices = @transform_6, window_bounds = array<i64: 1, 128>}, {transform_indices = @transform_7, window_bounds = array<i64: 16, 128>}]} {
    %c0 = arith.constant 0 : index
    %c0_0 = arith.constant 0 : index
    %0 = vector.load %arg2[%c0, %c0_0] : memref<16x256xbf16, #tpu.memory_space<vmem>>, vector<16x256xbf16>
    %c0_1 = arith.constant 0 : index
    %c0_2 = arith.constant 0 : index
    %1 = vector.load %arg3[%c0_1, %c0_2] : memref<256x128xbf16, #tpu.memory_space<vmem>>, vector<256x128xbf16>
    %cst = arith.constant dense<0.000000e+00> : vector<16x128xf32>
    %2 = tpu.matmul %0, %1, %cst {dimension_numbers = #tpu.dot_dimension_numbers<[1], [0], [0], [1], [0, 0, 1, 1], [], []>} : vector<16x256xbf16>, vector<256x128xbf16>, vector<16x128xf32> -> vector<16x128xf32>
    %c0_3 = arith.constant 0 : index
    %c0_4 = arith.constant 0 : index
    %3 = vector.load %arg4[%c0_3, %c0_4] : memref<1x128xf32, #tpu.memory_space<vmem>>, vector<1x128xf32>
    %4 = vector.broadcast %3 : vector<1x128xf32> to vector<16x128xf32>
    %5 = arith.addf %2, %4 : vector<16x128xf32>
    %cst_5 = arith.constant 0.000000e+00 : f32
    %6 = vector.broadcast %cst_5 : f32 to vector<16x128xf32>
    %7 = arith.maximumf %5, %6 : vector<16x128xf32>
    %8 = arith.truncf %7 : vector<16x128xf32> to vector<16x128xbf16>
    %c0_6 = arith.constant 0 : index
    %c0_7 = arith.constant 0 : index
    %9 = vector.load %arg5[%c0_6, %c0_7] : memref<128x128xbf16, #tpu.memory_space<vmem>>, vector<128x128xbf16>
    %cst_8 = arith.constant dense<0.000000e+00> : vector<16x128xf32>
    %10 = tpu.matmul %8, %9, %cst_8 {dimension_numbers = #tpu.dot_dimension_numbers<[1], [0], [0], [1], [0, 0, 1, 1], [], []>} : vector<16x128xbf16>, vector<128x128xbf16>, vector<16x128xf32> -> vector<16x128xf32>
    %c0_9 = arith.constant 0 : index
    %c0_10 = arith.constant 0 : index
    %11 = vector.load %arg6[%c0_9, %c0_10] : memref<1x128xf32, #tpu.memory_space<vmem>>, vector<1x128xf32>
    %12 = vector.broadcast %11 : vector<1x128xf32> to vector<16x128xf32>
    %13 = arith.addf %10, %12 : vector<16x128xf32>
    %cst_11 = arith.constant 0.000000e+00 : f32
    %14 = vector.broadcast %cst_11 : f32 to vector<16x128xf32>
    %15 = arith.maximumf %13, %14 : vector<16x128xf32>
    %16 = tpu.iota {dimensions = array<i32: 0>} : vector<16x128xi32>
    %17 = tpu.iota {dimensions = array<i32: 1>} : vector<16x128xi32>
    %c16_i32 = arith.constant 16 : i32
    %18 = arith.muli %arg0, %c16_i32 : i32
    %19 = vector.broadcast %18 : i32 to vector<16x128xi32>
    %20 = arith.addi %19, %16 : vector<16x128xi32>
    %c128_i32 = arith.constant 128 : i32
    %21 = vector.broadcast %c128_i32 : i32 to vector<16x128xi32>
    %22 = arith.muli %20, %21 : vector<16x128xi32>
    %23 = arith.addi %22, %17 : vector<16x128xi32>
    %c0_12 = arith.constant 0 : index
    %24 = memref.load %arg1[%c0_12] : memref<1xi32, #tpu.memory_space<smem>>
    %c-1640531527_i32 = arith.constant -1640531527 : i32
    %25 = arith.muli %24, %c-1640531527_i32 : i32
    %26 = vector.broadcast %25 : i32 to vector<16x128xi32>
    %27 = arith.xori %23, %26 : vector<16x128xi32>
    %c16_i32_13 = arith.constant 16 : i32
    %28 = vector.broadcast %c16_i32_13 : i32 to vector<16x128xi32>
    %29 = arith.shrui %27, %28 : vector<16x128xi32>
    %30 = arith.xori %27, %29 : vector<16x128xi32>
    %c2146121005_i32 = arith.constant 2146121005 : i32
    %31 = vector.broadcast %c2146121005_i32 : i32 to vector<16x128xi32>
    %32 = arith.muli %30, %31 : vector<16x128xi32>
    %c15_i32 = arith.constant 15 : i32
    %33 = vector.broadcast %c15_i32 : i32 to vector<16x128xi32>
    %34 = arith.shrui %32, %33 : vector<16x128xi32>
    %35 = arith.xori %32, %34 : vector<16x128xi32>
    %c-2073254261_i32 = arith.constant -2073254261 : i32
    %36 = vector.broadcast %c-2073254261_i32 : i32 to vector<16x128xi32>
    %37 = arith.muli %35, %36 : vector<16x128xi32>
    %c16_i32_14 = arith.constant 16 : i32
    %38 = vector.broadcast %c16_i32_14 : i32 to vector<16x128xi32>
    %39 = arith.shrui %37, %38 : vector<16x128xi32>
    %40 = arith.xori %37, %39 : vector<16x128xi32>
    %c1_i32 = arith.constant 1 : i32
    %41 = vector.broadcast %c1_i32 : i32 to vector<16x128xi32>
    %42 = arith.shrui %40, %41 : vector<16x128xi32>
    %c536870912_i32 = arith.constant 536870912 : i32
    %43 = vector.broadcast %c536870912_i32 : i32 to vector<16x128xi32>
    %44 = arith.cmpi sge, %42, %43 : vector<16x128xi32>
    %cst_15 = arith.constant 1.33333337 : f32
    %45 = vector.broadcast %cst_15 : f32 to vector<16x128xf32>
    %46 = arith.mulf %15, %45 : vector<16x128xf32>
    %cst_16 = arith.constant 0.000000e+00 : f32
    %47 = vector.broadcast %cst_16 : f32 to vector<16x128xf32>
    %48 = arith.select %44, %46, %47 : vector<16x128xi1>, vector<16x128xf32>
    %49 = arith.truncf %48 : vector<16x128xf32> to vector<16x128xbf16>
    %c0_17 = arith.constant 0 : index
    %c0_18 = arith.constant 0 : index
    %50 = vector.load %arg7[%c0_17, %c0_18] : memref<128x128xbf16, #tpu.memory_space<vmem>>, vector<128x128xbf16>
    %cst_19 = arith.constant dense<0.000000e+00> : vector<16x128xf32>
    %51 = tpu.matmul %49, %50, %cst_19 {dimension_numbers = #tpu.dot_dimension_numbers<[1], [0], [0], [1], [0, 0, 1, 1], [], []>} : vector<16x128xbf16>, vector<128x128xbf16>, vector<16x128xf32> -> vector<16x128xf32>
    %c0_20 = arith.constant 0 : index
    %c0_21 = arith.constant 0 : index
    %52 = vector.load %arg8[%c0_20, %c0_21] : memref<1x128xf32, #tpu.memory_space<vmem>>, vector<1x128xf32>
    %53 = vector.broadcast %52 : vector<1x128xf32> to vector<16x128xf32>
    %54 = arith.addf %51, %53 : vector<16x128xf32>
    %55 = tpu.iota {dimensions = array<i32: 1>} : vector<16x128xi32>
    %c10_i32 = arith.constant 10 : i32
    %56 = vector.broadcast %c10_i32 : i32 to vector<16x128xi32>
    %57 = arith.cmpi slt, %55, %56 : vector<16x128xi32>
    %cst_22 = arith.constant -1.000000e+30 : f32
    %58 = vector.broadcast %cst_22 : f32 to vector<16x128xf32>
    %59 = arith.select %57, %54, %58 : vector<16x128xi1>, vector<16x128xf32>
    %cst_23 = arith.constant dense<0xFF800000> : vector<16xf32>
    %60 = vector.multi_reduction <maximumf>, %59, %cst_23 [1] : vector<16x128xf32> to vector<16xf32>
    %61 = vector.shape_cast %60 : vector<16xf32> to vector<16x1xf32>
    %62 = vector.broadcast %61 : vector<16x1xf32> to vector<16x128xf32>
    %63 = arith.subf %59, %62 : vector<16x128xf32>
    %64 = math.exp %63 : vector<16x128xf32>
    %cst_24 = arith.constant dense<0.000000e+00> : vector<16xf32>
    %65 = vector.multi_reduction <add>, %64, %cst_24 [1] : vector<16x128xf32> to vector<16xf32>
    %66 = vector.shape_cast %65 : vector<16xf32> to vector<16x1xf32>
    %67 = math.log %66 : vector<16x1xf32>
    %68 = vector.broadcast %67 : vector<16x1xf32> to vector<16x128xf32>
    %69 = arith.subf %63, %68 : vector<16x128xf32>
    %70 = arith.truncf %69 : vector<16x128xf32> to vector<16x128xbf16>
    %c0_25 = arith.constant 0 : index
    %c0_26 = arith.constant 0 : index
    %71 = vector.load %arg9[%c0_25, %c0_26] : memref<16x128xbf16, #tpu.memory_space<vmem>>, vector<16x128xbf16>
    tpu.vector_store %arg9[%c0_25, %c0_26], %70 {strides = array<i32>} : memref<16x128xbf16, #tpu.memory_space<vmem>>, vector<16x128xbf16>,
    return
  }
  func.func @transform_0(%arg0: i32, %arg1: memref<1xi32, #tpu.memory_space<smem>>) -> (i32, i32) {
    %c0_i32 = arith.constant 0 : i32
    %c0_i32_0 = arith.constant 0 : i32
    return %arg0, %c0_i32 : i32, i32
  }
  func.func @transform_1(%arg0: i32, %arg1: memref<1xi32, #tpu.memory_space<smem>>) -> (i32, i32) {
    %c0_i32 = arith.constant 0 : i32
    %c0_i32_0 = arith.constant 0 : i32
    %c0_i32_1 = arith.constant 0 : i32
    return %c0_i32, %c0_i32_0 : i32, i32
  }
  func.func @transform_2(%arg0: i32, %arg1: memref<1xi32, #tpu.memory_space<smem>>) -> (i32, i32) {
    %c0_i32 = arith.constant 0 : i32
    %c0_i32_0 = arith.constant 0 : i32
    %c0_i32_1 = arith.constant 0 : i32
    return %c0_i32, %c0_i32_0 : i32, i32
  }
  func.func @transform_3(%arg0: i32, %arg1: memref<1xi32, #tpu.memory_space<smem>>) -> (i32, i32) {
    %c0_i32 = arith.constant 0 : i32
    %c0_i32_0 = arith.constant 0 : i32
    %c0_i32_1 = arith.constant 0 : i32
    return %c0_i32, %c0_i32_0 : i32, i32
  }
  func.func @transform_4(%arg0: i32, %arg1: memref<1xi32, #tpu.memory_space<smem>>) -> (i32, i32) {
    %c0_i32 = arith.constant 0 : i32
    %c0_i32_0 = arith.constant 0 : i32
    %c0_i32_1 = arith.constant 0 : i32
    return %c0_i32, %c0_i32_0 : i32, i32
  }
  func.func @transform_5(%arg0: i32, %arg1: memref<1xi32, #tpu.memory_space<smem>>) -> (i32, i32) {
    %c0_i32 = arith.constant 0 : i32
    %c0_i32_0 = arith.constant 0 : i32
    %c0_i32_1 = arith.constant 0 : i32
    return %c0_i32, %c0_i32_0 : i32, i32
  }
  func.func @transform_6(%arg0: i32, %arg1: memref<1xi32, #tpu.memory_space<smem>>) -> (i32, i32) {
    %c0_i32 = arith.constant 0 : i32
    %c0_i32_0 = arith.constant 0 : i32
    %c0_i32_1 = arith.constant 0 : i32
    return %c0_i32, %c0_i32_0 : i32, i32
  }
  func.func @transform_7(%arg0: i32, %arg1: memref<1xi32, #tpu.memory_space<smem>>) -> (i32, i32) {
    %c0_i32 = arith.constant 0 : i32
    %c0_i32_0 = arith.constant 0 : i32
    return %arg0, %c0_i32 : i32, i32
  }
}

</mosaic_0001>

<llo_original>
// kernel: tpu_custom_call.1
$region0: #{tpu_custom_call.1}
  #allocation0 [shape = 'u32[]', space=smem, size = 0x4, offset = 0x4, fixed_abs, tag = 'smem constant byte address 0x4 - core index']
  #allocation1 [shape = 'u32[144,128]{1,0:T(1,128)}', space=vmem, size = 0x12000, scoped, tag = 'internal scratch']
  #allocation2 [shape = 's32[1]{0}', space=sflag, size = 0x4, scoped, tag = 'scoped memory for tpu_custom_call.1']
  #allocation3 [shape = 's32[1]{0:T(128)S(6)}', space=smem, size = 0x200, scoped, tag = 'prefetched SMEM operand 0']
  %s0 = inlined_call_operand.<no memory space> [shape: s32[1], index: 0, kind: input, shape index: {}]
  %s1 = inlined_call_operand.hbm [shape: bf16[16,256], index: 1, kind: input, shape index: {}]
  %s2 = inlined_call_operand.hbm [shape: bf16[256,128], index: 2, kind: input, shape index: {}]
  %s3 = inlined_call_operand.vmem [shape: f32[1,128], index: 3, kind: input, shape index: {}]
  %s4 = inlined_call_operand.hbm [shape: bf16[128,128], index: 4, kind: input, shape index: {}]
  %s5 = inlined_call_operand.vmem [shape: f32[1,128], index: 5, kind: input, shape index: {}]
  %s6 = inlined_call_operand.hbm [shape: bf16[128,128], index: 6, kind: input, shape index: {}]
  %s7 = inlined_call_operand.vmem [shape: f32[1,128], index: 7, kind: input, shape index: {}]
  %s8 = inlined_call_operand.hbm [shape: bf16[16,128], index: 8, kind: output, shape index: {}]
  %s9 = sld [smem:[#allocation0]]
  $region54: #{tpu_custom_call.1} parent=0
    _
  %s11 = ssub.s32 1, %s9
  %s12 = scalar_select 0, %s11, %s9
  %13 = sst [smem:[#allocation3]] %s0
  $region1: #{tpu_custom_call.1} parent=0
    #allocation4 [shape = 'u8[8192]{0}', space=vmem, size = 0x2000, scoped, tag = 'input window, operand 1, single buffered']
    #allocation5 [shape = 's32[1]{0}', space=sflag, size = 0x4, scoped, tag = 'scoped memory for tpu_custom_call.1']
    #allocation6 [shape = 's32[1]{0}', space=sflag, size = 0x4, scoped, tag = 'scoped memory for tpu_custom_call.1']
    #allocation7 [shape = 'u8[65536]{0}', space=vmem, size = 0x10000, scoped, tag = 'input window, operand 2, single buffered']
    #allocation8 [shape = 's32[1]{0}', space=sflag, size = 0x4, scoped, tag = 'scoped memory for tpu_custom_call.1']
    #allocation9 [shape = 'u8[32768]{0}', space=vmem, size = 0x8000, scoped, tag = 'input window, operand 4, single buffered']
    #allocation10 [shape = 'u8[32768]{0}', space=vmem, size = 0x8000, scoped, tag = 'input window, operand 6, single buffered']
    #allocation11 [shape = 's32[1]{0}', space=sflag, size = 0x4, scoped, tag = 'scoped memory for tpu_custom_call.1']
    #allocation12 [shape = 'u8[4096]{0}', space=vmem, size = 0x1000, scoped, tag = 'output window, operand 0, single buffered']
    %14 = vsyncpa [#allocation5], 0
    %15 = vsyncpa [#allocation8], 0
    %16 = vsyncpa [#allocation11], 0
    %17 = vsyncpa [#allocation6], 0
    // Predicated region
    $region2: #{tpu_custom_call.1} parent=1 // pred_check
      _
    $region3: #{tpu_custom_call.1} parent=1 // pred_check_branch
      %19 = sbr.rel (0) target = $region5
    $region4: #{tpu_custom_call.1} parent=1 // pred_region
      %s21 = ssub.s32 256, 256
      %22 = vsyncadd [#allocation5], %s21
      %s23 = sshll.u32 [#allocation4], 4
      %s24 = int_to_ptr.vmem [resolvable:$true] %s23
      %29 = dma.hbm_to_vmem [thread:$0]  %s1, 256, %s24, [#allocation5], 128, 128, 8
    $region5: #{tpu_custom_call.1} parent=1 // pred_fallthru
      _
    // Predicated region
    $region6: #{tpu_custom_call.1} parent=1 // pred_check
      _
    $region7: #{tpu_custom_call.1} parent=1 // pred_check_branch
      %31 = sbr.rel (0) target = $region9
    $region8: #{tpu_custom_call.1} parent=1 // pred_region
      %s33 = ssub.s32 2048, 2048
      %34 = vsyncadd [#allocation8], %s33
      %s35 = sshll.u32 [#allocation7], 4
      %s36 = int_to_ptr.vmem [resolvable:$true] %s35
      %41 = dma.hbm_to_vmem [thread:$0]  %s2, 2048, %s36, [#allocation8], 64, 64, 4
    $region9: #{tpu_custom_call.1} parent=1 // pred_fallthru
      _
    // Predicated region
    $region10: #{tpu_custom_call.1} parent=1 // pred_check
      _
    $region11: #{tpu_custom_call.1} parent=1 // pred_check_branch
      %43 = sbr.rel (0) target = $region13
    $region12: #{tpu_custom_call.1} parent=1 // pred_region
      _
    $region13: #{tpu_custom_call.1} parent=1 // pred_fallthru
      _
    // Predicated region
    $region14: #{tpu_custom_call.1} parent=1 // pred_check
      _
    $region15: #{tpu_custom_call.1} parent=1 // pred_check_branch
      %45 = sbr.rel (0) target = $region17
    $region16: #{tpu_custom_call.1} parent=1 // pred_region
      %s47 = ssub.s32 1024, 1024
      %48 = vsyncadd [#allocation8], %s47
      %s49 = sshll.u32 [#allocation9], 4
      %s50 = int_to_ptr.vmem [resolvable:$true] %s49
      %55 = dma.hbm_to_vmem [thread:$0]  %s4, 1024, %s50, [#allocation8], 64, 64, 4
    $region17: #{tpu_custom_call.1} parent=1 // pred_fallthru
      _
    // Predicated region
    $region18: #{tpu_custom_call.1} parent=1 // pred_check
      _
    $region19: #{tpu_custom_call.1} parent=1 // pred_check_branch
      %57 = sbr.rel (0) target = $region21
    $region20: #{tpu_custom_call.1} parent=1 // pred_region
      _
    $region21: #{tpu_custom_call.1} parent=1 // pred_fallthru
      _
    // Predicated region
    $region22: #{tpu_custom_call.1} parent=1 // pred_check
      _
    $region23: #{tpu_custom_call.1} parent=1 // pred_check_branch
      %59 = sbr.rel (0) target = $region25
    $region24: #{tpu_custom_call.1} parent=1 // pred_region
      %s61 = ssub.s32 1024, 1024
      %62 = vsyncadd [#allocation11], %s61
      %s63 = sshll.u32 [#allocation10], 4
      %s64 = int_to_ptr.vmem [resolvable:$true] %s63
      %69 = dma.hbm_to_vmem [thread:$0]  %s6, 1024, %s64, [#allocation11], 64, 64, 4
    $region25: #{tpu_custom_call.1} parent=1 // pred_fallthru
      _
    // Predicated region
    $region26: #{tpu_custom_call.1} parent=1 // pred_check
      _
    $region27: #{tpu_custom_call.1} parent=1 // pred_check_branch
      %71 = sbr.rel (0) target = $region29
    $region28: #{tpu_custom_call.1} parent=1 // pred_region
      _
    $region29: #{tpu_custom_call.1} parent=1 // pred_fallthru
      _
    // Predicated region
    $region30: #{tpu_custom_call.1} parent=1 // pred_check
      _
    $region31: #{tpu_custom_call.1} parent=1 // pred_check_branch
      %73 = sbr.rel (0) target = $region33
    $region32: #{tpu_custom_call.1} parent=1 // pred_region
      %74 = dma.done [#allocation5], 256
    $region33: #{tpu_custom_call.1} parent=1 // pred_fallthru
      _
    // Predicated region
    $region34: #{tpu_custom_call.1} parent=1 // pred_check
      _
    $region35: #{tpu_custom_call.1} parent=1 // pred_check_branch
      %76 = sbr.rel (0) target = $region37
    $region36: #{tpu_custom_call.1} parent=1 // pred_region
      %77 = dma.done [#allocation8], 2048
    $region37: #{tpu_custom_call.1} parent=1 // pred_fallthru
      _
    // Predicated region
    $region38: #{tpu_custom_call.1} parent=1 // pred_check
      _
    $region39: #{tpu_custom_call.1} parent=1 // pred_check_branch
      %79 = sbr.rel (0) target = $region41
    $region40: #{tpu_custom_call.1} parent=1 // pred_region
      %80 = dma.done [#allocation8], 1024
    $region41: #{tpu_custom_call.1} parent=1 // pred_fallthru
      _
    // Predicated region
    $region42: #{tpu_custom_call.1} parent=1 // pred_check
      _
    $region43: #{tpu_custom_call.1} parent=1 // pred_check_branch
      %82 = sbr.rel (0) target = $region45
    $region44: #{tpu_custom_call.1} parent=1 // pred_region
      %83 = dma.done [#allocation11], 1024
    $region45: #{tpu_custom_call.1} parent=1 // pred_fallthru
      _
    %v85 = vld [vmem:[#allocation4] sm:$0xff]
    %v86 = vld [vmem:[#allocation4 + $0x8] sm:$0xff]
    %v87 = vld [vmem:[#allocation7] sm:$0xf]
    %v88 = vld [vmem:[#allocation7 + $0x4] sm:$0xf]
    %v89 = vld [vmem:[#allocation7 + $0x8] sm:$0xf]
    %v90 = vld [vmem:[#allocation7 + $0xc] sm:$0xf]
    %v91 = vld [vmem:[#allocation7 + $0x10] sm:$0xf]
    %v92 = vld [vmem:[#allocation7 + $0x14] sm:$0xf]
    %v93 = vld [vmem:[#allocation7 + $0x18] sm:$0xf]
    %v94 = vld [vmem:[#allocation7 + $0x1c] sm:$0xf]
    %v95 = vld [vmem:[#allocation7 + $0x20] sm:$0xf]
    %v96 = vld [vmem:[#allocation7 + $0x24] sm:$0xf]
    %v97 = vld [vmem:[#allocation7 + $0x28] sm:$0xf]
    %v98 = vld [vmem:[#allocation7 + $0x2c] sm:$0xf]
    %v99 = vld [vmem:[#allocation7 + $0x30] sm:$0xf]
    %v100 = vld [vmem:[#allocation7 + $0x34] sm:$0xf]
    %v101 = vld [vmem:[#allocation7 + $0x38] sm:$0xf]
    %v102 = vld [vmem:[#allocation7 + $0x3c] sm:$0xf]
    %v103 = vld [vmem:[#allocation7 + $0x40] sm:$0xf]
    %v104 = vld [vmem:[#allocation7 + $0x44] sm:$0xf]
    %v105 = vld [vmem:[#allocation7 + $0x48] sm:$0xf]
    %v106 = vld [vmem:[#allocation7 + $0x4c] sm:$0xf]
    %v107 = vld [vmem:[#allocation7 + $0x50] sm:$0xf]
    %v108 = vld [vmem:[#allocation7 + $0x54] sm:$0xf]
    %v109 = vld [vmem:[#allocation7 + $0x58] sm:$0xf]
    %v110 = vld [vmem:[#allocation7 + $0x5c] sm:$0xf]
    %v111 = vld [vmem:[#allocation7 + $0x60] sm:$0xf]
    %v112 = vld [vmem:[#allocation7 + $0x64] sm:$0xf]
    %v113 = vld [vmem:[#allocation7 + $0x68] sm:$0xf]
    %v114 = vld [vmem:[#allocation7 + $0x6c] sm:$0xf]
    %v115 = vld [vmem:[#allocation7 + $0x70] sm:$0xf]
    %v116 = vld [vmem:[#allocation7 + $0x74] sm:$0xf]
    %v117 = vld [vmem:[#allocation7 + $0x78] sm:$0xf]
    %v118 = vld [vmem:[#allocation7 + $0x7c] sm:$0xf]
    %v119 = vld [vmem:[%s3] sm:$0x1]
    %v121 = vlaneseq
    %v122 = vshrl.u32 %v121, 7
    %v123 = vsub.s32 0, %v122
    %v124 = vrot.slane %v119, %v123
    %v128 = vunpack.c.l.b16 %v85
    %v129 = vunpack.c.h.b16 %v85
    %v130 = vunpack.c.l.b16 %v86
    %v131 = vunpack.c.h.b16 %v86
    %v132 = vpack.c.b16 %v130, %v128
    %v133 = vpack.c.b16 %v131, %v129
    %v168 = vunpack.c.l.b16 %v87
    %v169 = vunpack.c.l.b16 %v88
    %v170 = vunpack.c.l.b16 %v89
    %v171 = vunpack.c.l.b16 %v90
    %v172 = vunpack.c.l.b16 %v91
    %v173 = vunpack.c.l.b16 %v92
    %v174 = vunpack.c.l.b16 %v93
    %v175 = vunpack.c.l.b16 %v94
    %v176 = vunpack.c.l.b16 %v95
    %v177 = vunpack.c.l.b16 %v96
    %v178 = vunpack.c.l.b16 %v97
    %v179 = vunpack.c.l.b16 %v98
    %v180 = vunpack.c.l.b16 %v99
    %v181 = vunpack.c.l.b16 %v100
    %v182 = vunpack.c.l.b16 %v101
    %v183 = vunpack.c.l.b16 %v102
    %v184 = vunpack.c.l.b16 %v103
    %v185 = vunpack.c.l.b16 %v104
    %v186 = vunpack.c.l.b16 %v105
    %v187 = vunpack.c.l.b16 %v106
    %v188 = vunpack.c.l.b16 %v107
    %v189 = vunpack.c.l.b16 %v108
    %v190 = vunpack.c.l.b16 %v109
    %v191 = vunpack.c.l.b16 %v110
    %v192 = vunpack.c.l.b16 %v111
    %v193 = vunpack.c.l.b16 %v112
    %v194 = vunpack.c.l.b16 %v113
    %v195 = vunpack.c.l.b16 %v114
    %v196 = vunpack.c.l.b16 %v115
    %v197 = vunpack.c.l.b16 %v116
    %v198 = vunpack.c.l.b16 %v117
    %v199 = vunpack.c.l.b16 %v118
    %v200 = vpack.c.b16 %v169, %v168
    %v201 = vpack.c.b16 %v171, %v170
    %v202 = vpack.c.b16 %v173, %v172
    %v203 = vpack.c.b16 %v175, %v174
    %v204 = vpack.c.b16 %v177, %v176
    %v205 = vpack.c.b16 %v179, %v178
    %v206 = vpack.c.b16 %v181, %v180
    %v207 = vpack.c.b16 %v183, %v182
    %v208 = vpack.c.b16 %v185, %v184
    %v209 = vpack.c.b16 %v187, %v186
    %v210 = vpack.c.b16 %v189, %v188
    %v211 = vpack.c.b16 %v191, %v190
    %v212 = vpack.c.b16 %v193, %v192
    %v213 = vpack.c.b16 %v195, %v194
    %v214 = vpack.c.b16 %v197, %v196
    %v215 = vpack.c.b16 %v199, %v198
    %232 = vmatprep.subr.bf16.mxu0 0
    %233 = vmatpush1.bf16.msra.mxu0 %v207
    %234 = vmatprep.subr.bf16.mxu0 0
    %235 = vmatpush1.bf16.msra.mxu0 %v206
    %236 = vmatprep.subr.bf16.mxu0 0
    %237 = vmatpush1.bf16.msra.mxu0 %v205
    %238 = vmatprep.subr.bf16.mxu0 0
    %239 = vmatpush1.bf16.msra.mxu0 %v204
    %240 = vmatprep.subr.bf16.mxu0 0
    %241 = vmatpush1.bf16.msra.mxu0 %v203
    %242 = vmatprep.subr.bf16.mxu0 0
    %243 = vmatpush1.bf16.msra.mxu0 %v202
    %244 = vmatprep.subr.bf16.mxu0 0
    %245 = vmatpush1.bf16.msra.mxu0 %v201
    %246 = vmatprep.subr.bf16.mxu0 0
    %247 = vmatpush1.bf16.msra.mxu0 %v200
    %248 = vmatprep.subr.bf16.mxu0 0
    %249 = vmatpush2.bf16.msra.mxu0 %v215
    %250 = vmatprep.subr.bf16.mxu0 0
    %251 = vmatpush2.bf16.msra.mxu0 %v214
    %252 = vmatprep.subr.bf16.mxu0 0
    %253 = vmatpush2.bf16.msra.mxu0 %v213
    %254 = vmatprep.subr.bf16.mxu0 0
    %255 = vmatpush2.bf16.msra.mxu0 %v212
    %256 = vmatprep.subr.bf16.mxu0 0
    %257 = vmatpush2.bf16.msra.mxu0 %v211
    %258 = vmatprep.subr.bf16.mxu0 0
    %259 = vmatpush2.bf16.msra.mxu0 %v210
    %260 = vmatprep.subr.bf16.mxu0 0
    %261 = vmatpush2.bf16.msra.mxu0 %v209
    %262 = vmatprep.subr.bf16.mxu0 0
    %263 = vmatpush2.bf16.msra.mxu0 %v208
    %264 = vmatprep.mubr.bf16.mxu0 %v133
    %265 = vmatmul.mubr.bf16.gmra.mxu0 %v132
    %v266 = vpop.f32.mrf.mxu0
    %v267 = vadd.f32 %v124, %v266
    %v268 = vpop.f32.mrf.mxu0
    %v269 = vpop.f32.mrf.mxu0
    %v270 = vadd.f32 %v124, %v269
    %v271 = vpop.f32.mrf.mxu0
    %272 = vdwg.mxu0
    %v273 = vmax.f32 %v267, 0.0
    %v274 = vmax.f32 %v270, 0.0
    %v275 = vpack.c.bf16 %v274, %v273
    %v276 = vld [vmem:[#allocation9] sm:$0xf]
    %v277 = vld [vmem:[#allocation9 + $0x4] sm:$0xf]
    %v278 = vld [vmem:[#allocation9 + $0x8] sm:$0xf]
    %v279 = vld [vmem:[#allocation9 + $0xc] sm:$0xf]
    %v280 = vld [vmem:[#allocation9 + $0x10] sm:$0xf]
    %v281 = vld [vmem:[#allocation9 + $0x14] sm:$0xf]
    %v282 = vld [vmem:[#allocation9 + $0x18] sm:$0xf]
    %v283 = vld [vmem:[#allocation9 + $0x1c] sm:$0xf]
    %v284 = vld [vmem:[#allocation9 + $0x20] sm:$0xf]
    %v285 = vld [vmem:[#allocation9 + $0x24] sm:$0xf]
    %v286 = vld [vmem:[#allocation9 + $0x28] sm:$0xf]
    %v287 = vld [vmem:[#allocation9 + $0x2c] sm:$0xf]
    %v288 = vld [vmem:[#allocation9 + $0x30] sm:$0xf]
    %v289 = vld [vmem:[#allocation9 + $0x34] sm:$0xf]
    %v290 = vld [vmem:[#allocation9 + $0x38] sm:$0xf]
    %v291 = vld [vmem:[#allocation9 + $0x3c] sm:$0xf]
    %v292 = vld [vmem:[%s5] sm:$0x1]
    %v294 = vlaneseq
    %v295 = vshrl.u32 %v294, 7
    %v296 = vsub.s32 0, %v295
    %v297 = vrot.slane %v292, %v296
    %v315 = vunpack.c.l.b16 %v276
    %v316 = vunpack.c.l.b16 %v277
    %v317 = vunpack.c.l.b16 %v278
    %v318 = vunpack.c.l.b16 %v279
    %v319 = vunpack.c.l.b16 %v280
    %v320 = vunpack.c.l.b16 %v281
    %v321 = vunpack.c.l.b16 %v282
    %v322 = vunpack.c.l.b16 %v283
    %v323 = vunpack.c.l.b16 %v284
    %v324 = vunpack.c.l.b16 %v285
    %v325 = vunpack.c.l.b16 %v286
    %v326 = vunpack.c.l.b16 %v287
    %v327 = vunpack.c.l.b16 %v288
    %v328 = vunpack.c.l.b16 %v289
    %v329 = vunpack.c.l.b16 %v290
    %v330 = vunpack.c.l.b16 %v291
    %v331 = vpack.c.b16 %v316, %v315
    %v332 = vpack.c.b16 %v318, %v317
    %v333 = vpack.c.b16 %v320, %v319
    %v334 = vpack.c.b16 %v322, %v321
    %v335 = vpack.c.b16 %v324, %v323
    %v336 = vpack.c.b16 %v326, %v325
    %v337 = vpack.c.b16 %v328, %v327
    %v338 = vpack.c.b16 %v330, %v329
    %347 = vmatprep.subr.bf16.mxu0 0
    %348 = vmatpush1.bf16.msra.mxu0 %v338
    %349 = vmatprep.subr.bf16.mxu0 0
    %350 = vmatpush1.bf16.msra.mxu0 %v337
    %351 = vmatprep.subr.bf16.mxu0 0
    %352 = vmatpush1.bf16.msra.mxu0 %v336
    %353 = vmatprep.subr.bf16.mxu0 0
    %354 = vmatpush1.bf16.msra.mxu0 %v335
    %355 = vmatprep.subr.bf16.mxu0 0
    %356 = vmatpush1.bf16.msra.mxu0 %v334
    %357 = vmatprep.subr.bf16.mxu0 0
    %358 = vmatpush1.bf16.msra.mxu0 %v333
    %359 = vmatprep.subr.bf16.mxu0 0
    %360 = vmatpush1.bf16.msra.mxu0 %v332
    %361 = vmatprep.subr.bf16.mxu0 0
    %362 = vmatpush1.bf16.msra.mxu0 %v331
    %363 = vmatprep.subr.bf16.mxu0 0
    %364 = vmatpush2.bf16.msra.mxu0 0
    %365 = vmatprep.subr.bf16.mxu0 0
    %366 = vmatpush2.bf16.msra.mxu0 0
    %367 = vmatprep.subr.bf16.mxu0 0
    %368 = vmatpush2.bf16.msra.mxu0 0
    %369 = vmatprep.subr.bf16.mxu0 0
    %370 = vmatpush2.bf16.msra.mxu0 0
    %371 = vmatprep.subr.bf16.mxu0 0
    %372 = vmatpush2.bf16.msra.mxu0 0
    %373 = vmatprep.subr.bf16.mxu0 0
    %374 = vmatpush2.bf16.msra.mxu0 0
    %375 = vmatprep.subr.bf16.mxu0 0
    %376 = vmatpush2.bf16.msra.mxu0 0
    %377 = vmatprep.subr.bf16.mxu0 0
    %378 = vmatpush2.bf16.msra.mxu0 0
    %379 = vmatprep.mubr.bf16.mxu0 0
    %380 = vmatmul.mubr.bf16.gmra.mxu0 %v275
    %v381 = vpop.f32.mrf.mxu0
    %v382 = vadd.f32 %v297, %v381
    %v383 = vpop.f32.mrf.mxu0
    %v384 = vpop.f32.mrf.mxu0
    %v385 = vadd.f32 %v297, %v384
    %v386 = vpop.f32.mrf.mxu0
    %387 = vdwg.mxu0
    %v388 = vmax.f32 %v382, 0.0
    %v389 = vmax.f32 %v385, 0.0
    %v390 = vlaneseq
    %v391 = vshrl.u32 %v390, 7
    %v392 = vadd.s32 %v391, 8
    %v393 = vlaneseq
    %v394 = vand.u32 %v393, 127
    %s395 = smul.u32 0, 16
    %v396 = vstv %s395
    %v397 = vadd.s32 %v396, %v391
    %v398 = vadd.s32 %v396, %v392
    %v399 = vmul.u32 %v397, 128
    %v400 = vmul.u32 %v398, 128
    %v401 = vadd.s32 %v399, %v394
    %v402 = vadd.s32 %v400, %v394
    %s403 = sld [smem:[#allocation3]]
    %s404 = smul.u32 %s403, 2654435769
    %v405 = vstv %s404
    %v406 = vxor.u32 %v401, %v405
    %v407 = vxor.u32 %v402, %v405
    %v408 = vshrl.u32 %v406, 16
    %v409 = vshrl.u32 %v407, 16
    %v410 = vxor.u32 %v406, %v408
    %v411 = vxor.u32 %v407, %v409
    %v412 = vmul.u32 %v410, 2146121005
    %v413 = vmul.u32 %v411, 2146121005
    %v414 = vshrl.u32 %v412, 15
    %v415 = vshrl.u32 %v413, 15
    %v416 = vxor.u32 %v412, %v414
    %v417 = vxor.u32 %v413, %v415
    %v418 = vmul.u32 %v416, 2221713035
    %v419 = vmul.u32 %v417, 2221713035
    %v420 = vshrl.u32 %v418, 16
    %v421 = vshrl.u32 %v419, 16
    %v422 = vxor.u32 %v418, %v420
    %v423 = vxor.u32 %v419, %v421
    %v424 = vshrl.u32 %v422, 1
    %v425 = vshrl.u32 %v423, 1
    %vm426 = vcmp.ge.s32.totalorder %v424, 536870912
    %vm427 = vcmp.ge.s32.totalorder %v425, 536870912
    %v428 = vmul.f32 %v388, 1.3333334
    %v429 = vmul.f32 %v389, 1.3333334
    %v430 = vsel %vm426, %v428, 0.0
    %v431 = vsel %vm427, %v429, 0.0
    %v432 = vpack.c.bf16 %v431, %v430
    %v433 = vld [vmem:[#allocation10] sm:$0xf]
    %v434 = vld [vmem:[#allocation10 + $0x4] sm:$0xf]
    %v435 = vld [vmem:[#allocation10 + $0x8] sm:$0xf]
    %v436 = vld [vmem:[#allocation10 + $0xc] sm:$0xf]
    %v437 = vld [vmem:[#allocation10 + $0x10] sm:$0xf]
    %v438 = vld [vmem:[#allocation10 + $0x14] sm:$0xf]
    %v439 = vld [vmem:[#allocation10 + $0x18] sm:$0xf]
    %v440 = vld [vmem:[#allocation10 + $0x1c] sm:$0xf]
    %v441 = vld [vmem:[#allocation10 + $0x20] sm:$0xf]
    %v442 = vld [vmem:[#allocation10 + $0x24] sm:$0xf]
    %v443 = vld [vmem:[#allocation10 + $0x28] sm:$0xf]
    %v444 = vld [vmem:[#allocation10 + $0x2c] sm:$0xf]
    %v445 = vld [vmem:[#allocation10 + $0x30] sm:$0xf]
    %v446 = vld [vmem:[#allocation10 + $0x34] sm:$0xf]
    %v447 = vld [vmem:[#allocation10 + $0x38] sm:$0xf]
    %v448 = vld [vmem:[#allocation10 + $0x3c] sm:$0xf]
    %v449 = vld [vmem:[%s7] sm:$0x1]
    %v451 = vlaneseq
    %v452 = vshrl.u32 %v451, 7
    %v453 = vsub.s32 0, %v452
    %v454 = vrot.slane %v449, %v453
    %v472 = vunpack.c.l.b16 %v433
    %v473 = vunpack.c.l.b16 %v434
    %v474 = vunpack.c.l.b16 %v435
    %v475 = vunpack.c.l.b16 %v436
    %v476 = vunpack.c.l.b16 %v437
    %v477 = vunpack.c.l.b16 %v438
    %v478 = vunpack.c.l.b16 %v439
    %v479 = vunpack.c.l.b16 %v440
    %v480 = vunpack.c.l.b16 %v441
    %v481 = vunpack.c.l.b16 %v442
    %v482 = vunpack.c.l.b16 %v443
    %v483 = vunpack.c.l.b16 %v444
    %v484 = vunpack.c.l.b16 %v445
    %v485 = vunpack.c.l.b16 %v446
    %v486 = vunpack.c.l.b16 %v447
    %v487 = vunpack.c.l.b16 %v448
    %v488 = vpack.c.b16 %v473, %v472
    %v489 = vpack.c.b16 %v475, %v474
    %v490 = vpack.c.b16 %v477, %v476
    %v491 = vpack.c.b16 %v479, %v478
    %v492 = vpack.c.b16 %v481, %v480
    %v493 = vpack.c.b16 %v483, %v482
    %v494 = vpack.c.b16 %v485, %v484
    %v495 = vpack.c.b16 %v487, %v486
    %504 = vmatprep.subr.bf16.mxu0 0
    %505 = vmatpush1.bf16.msra.mxu0 %v495
    %506 = vmatprep.subr.bf16.mxu0 0
    %507 = vmatpush1.bf16.msra.mxu0 %v494
    %508 = vmatprep.subr.bf16.mxu0 0
    %509 = vmatpush1.bf16.msra.mxu0 %v493
    %510 = vmatprep.subr.bf16.mxu0 0
    %511 = vmatpush1.bf16.msra.mxu0 %v492
    %512 = vmatprep.subr.bf16.mxu0 0
    %513 = vmatpush1.bf16.msra.mxu0 %v491
    %514 = vmatprep.subr.bf16.mxu0 0
    %515 = vmatpush1.bf16.msra.mxu0 %v490
    %516 = vmatprep.subr.bf16.mxu0 0
    %517 = vmatpush1.bf16.msra.mxu0 %v489
    %518 = vmatprep.subr.bf16.mxu0 0
    %519 = vmatpush1.bf16.msra.mxu0 %v488
    %520 = vmatprep.subr.bf16.mxu0 0
    %521 = vmatpush2.bf16.msra.mxu0 0
    %522 = vmatprep.subr.bf16.mxu0 0
    %523 = vmatpush2.bf16.msra.mxu0 0
    %524 = vmatprep.subr.bf16.mxu0 0
    %525 = vmatpush2.bf16.msra.mxu0 0
    %526 = vmatprep.subr.bf16.mxu0 0
    %527 = vmatpush2.bf16.msra.mxu0 0
    %528 = vmatprep.subr.bf16.mxu0 0
    %529 = vmatpush2.bf16.msra.mxu0 0
    %530 = vmatprep.subr.bf16.mxu0 0
    %531 = vmatpush2.bf16.msra.mxu0 0
    %532 = vmatprep.subr.bf16.mxu0 0
    %533 = vmatpush2.bf16.msra.mxu0 0
    %534 = vmatprep.subr.bf16.mxu0 0
    %535 = vmatpush2.bf16.msra.mxu0 0
    %536 = vmatprep.mubr.bf16.mxu0 0
    %537 = vmatmul.mubr.bf16.gmra.mxu0 %v432
    %v538 = vpop.f32.mrf.mxu0
    %v539 = vadd.f32 %v454, %v538
    %v540 = vpop.f32.mrf.mxu0
    %v541 = vpop.f32.mrf.mxu0
    %v542 = vadd.f32 %v454, %v541
    %v543 = vpop.f32.mrf.mxu0
    %544 = vdwg.mxu0
    %vm545 = vcmp.lt.s32.totalorder %v394, 10
    %v546 = vsel %vm545, %v539, -1e+30
    %v547 = vsel %vm545, %v542, -1e+30
    %548 = vmax.xlane.f32.xlu0 %v546
    %v549 = vpop.xlane.xlu0 %548
    %550 = vmax.xlane.f32.xlu0 %v547
    %v551 = vpop.xlane.xlu0 %550
    %v552 = vsub.f32 %v546, %v549
    %v553 = vsub.f32 %v547, %v551
    %v554 = vmul.f32 %v552, 1.442695
    %v555 = vpow.pop %v554
    %v556 = vmul.f32 %v553, 1.442695
    %v557 = vpow.pop %v556
    %558 = vadd.xlane.f32.xlu0 %v555
    %v559 = vpop.xlane.xlu0 %558
    %560 = vadd.xlane.f32.xlu0 %v557
    %v561 = vpop.xlane.xlu0 %560
    %v562 = vlog2.pop %v559
    %v563 = vmul.f32 %v562, 0.6931472
    %v564 = vlog2.pop %v561
    %v565 = vmul.f32 %v564, 0.6931472
    %v566 = vsub.f32 %v552, %v563
    %v567 = vsub.f32 %v553, %v565
    %v568 = vpack.c.bf16 %v567, %v566
    %v570 = vunpack.c.l.b16 %v568
    %v571 = vunpack.c.h.b16 %v568
    %v572 = vpack.c.b16 %v570, %v570
    %v573 = vpack.c.b16 %v571, %v571
    %576 = vst [vmem:[#allocation12] sm:$0xf] %v572
    %577 = vst [vmem:[#allocation12 + $0x4] sm:$0xf] %v573
    // Predicated region
    $region46: #{tpu_custom_call.1} parent=1 // pred_check
      _
    $region47: #{tpu_custom_call.1} parent=1 // pred_check_branch
      %579 = sbr.rel (0) target = $region49
    $region48: #{tpu_custom_call.1} parent=1 // pred_region
      %s581 = ssub.s32 128, 128
      %582 = vsyncadd [#allocation6], %s581
      %s583 = sshll.u32 [#allocation12], 4
      %s584 = int_to_ptr.vmem [resolvable:$true] %s583
      %589 = dma.vmem_to_hbm [thread:$0]  %s584, 128, %s8, [#allocation6], 64, 64, 4
    $region49: #{tpu_custom_call.1} parent=1 // pred_fallthru
      _
    // Predicated region
    $region50: #{tpu_custom_call.1} parent=1 // pred_check
      _
    $region51: #{tpu_custom_call.1} parent=1 // pred_check_branch
      %591 = sbr.rel (0) target = $region53
    $region52: #{tpu_custom_call.1} parent=1 // pred_region
      %592 = dma.done [#allocation6], 128
    $region53: #{tpu_custom_call.1} parent=1 // pred_fallthru
      _
    %593 = vsyncpa [#allocation5], 1
    %594 = vsyncpa [#allocation8], 1
    %595 = vsyncpa [#allocation11], 1
    %596 = vsyncpa [#allocation6], 1

</llo_original>
